<compile_context>
chip_gen: v5e
topology: v5e:2x2
jax: 0.10.0
libtpu: 0.0.40
codegen_flags: <defaults>
</compile_context>

<pallas_src>
import functools
import math

import jax
import jax.numpy as jnp
from jax.experimental import pallas as pl
from jax.experimental.pallas import tpu as pltpu

LANES = 128
SUBLANES = 8
MAX_BLOCK_ROWS = 2048          # (2048, 128) f32 tile = 1 MiB; 2 in x 2 bufs = 4 MiB
VMEM_LIMIT_BYTES = 32 * 1024 * 1024  # fits v5e/v6e/v7x; above v5e's 16 MiB default


def _num_parallel_cores():
    """2 on dual-TensorCore chips (v7x); 1 on single-TC v5e/v6e (and fallback)."""
    try:
        kind = jax.devices()[0].device_kind.lower()
    except Exception:
        return 1
    return 2 if "7" in kind else 1


def _row_align(dtype):
    """Minimum sublane multiple for a dtype: 8 (32-bit), 16 (16-bit), 32 (8-bit)."""
    bits = jnp.dtype(dtype).itemsize * 8
    return max(SUBLANES, 256 // max(bits, 8))


def _round_up(x, m):
    return ((x + m - 1) // m) * m


def _focal_loss_kernel(x_ref, y_ref, out_ref, *, alpha, gamma, block_rows,
                       binary_labels):
    """Per-tile focal loss accumulated into a vreg-shaped resident output block.

    x_ref, y_ref : (block_rows, 128) tiles (logits, labels), any dtype
    out_ref      : (1, 8, 128) per-core partial-sum slab, resident across axis 1
    """
    i = pl.program_id(1)

    @pl.when(i == 0)
    def _():
        out_ref[...] = jnp.zeros_like(out_ref)

    x = x_ref[...].astype(jnp.float32)
    y = y_ref[...].astype(jnp.float32)

    # Numerically-stable BCE-with-logits (matches torch's formulation):
    #   BCE = max(x, 0) - x*y + log1p(exp(-|x|))
    e = jnp.exp(-jnp.abs(x))  # computed once, reused below
    bce = jnp.maximum(x, 0.0) - x * y + jnp.log1p(e)

    if binary_labels:
        # pt = exp(-BCE) = exp(x*y - max(x,0)) / (1 + e).  For y in {0, 1} the
        # numerator is a select between 1 and the already-computed e, so this
        # saves one EUP exp per element (binding on v5e).  Exact division.
        numer = jnp.where(jnp.logical_xor(x > 0.0, y > 0.5), e, 1.0)
        pt = numer / (1.0 + e)
    else:
        pt = jnp.exp(-bce)
    t = 1.0 - pt

    # Strength-reduce the focal power for common static gammas: avoids
    # exp(gamma*log(t)) -> 2 extra EUP transcendentals per element.
    if gamma == 2.0:
        focal = t * t
    elif gamma == 1.0:
        focal = t
    elif gamma == 0.0:
        focal = jnp.ones_like(t)
    else:
        focal = t ** gamma
    loss = alpha * focal * bce

    # Vreg-shaped accumulation: pure VPU adds per step; the single cross-lane
    # reduce happens once, in the wrapper epilogue.
    out_ref[0] += loss.reshape(block_rows // SUBLANES, SUBLANES, LANES).sum(axis=0)


def binary_focal_loss(logits, labels, alpha=0.25, gamma=2.0, binary_labels=True):
    """Pallas-backed equivalent of BinaryFocalLoss.forward (returns scalar f32).

    Set binary_labels=False if labels are soft (not exactly {0,1}); the default
    fast path algebraically assumes hard binary labels.
    """
    assert logits.shape == labels.shape
    n_valid = int(logits.size)

    x = logits.reshape(-1)
    y = labels.reshape(-1)

    num_cores = _num_parallel_cores()
    row_align = max(_row_align(logits.dtype), _row_align(labels.dtype))

    # Tile sizing: large lane-dense blocks (mem-bound kernel), split across the
    # leading "parallel" axis only when there are 2 TensorCores.
    rows_valid = pl.cdiv(n_valid, LANES)
    rows_per_core = _round_up(max(pl.cdiv(rows_valid, num_cores), row_align), row_align)
    block_rows = min(MAX_BLOCK_ROWS, rows_per_core)
    tiles_per_core = pl.cdiv(rows_valid, num_cores * block_rows)
    total_rows = num_cores * tiles_per_core * block_rows
    padded = total_rows * LANES
    pad = padded - n_valid
    if pad:
        # TODO(synk): for ragged sizes inside a larger jit this pad should fuse
        # with the upstream producer; padded zeros are corrected analytically
        # below, so no in-kernel mask is needed.
        x = jnp.pad(x, (0, pad))
        y = jnp.pad(y, (0, pad))

    x = x.reshape(total_rows, LANES)
    y = y.reshape(total_rows, LANES)

    tile_spec = pl.BlockSpec((block_rows, LANES),
                             lambda c, i: (c * tiles_per_core + i, 0))

    kernel = functools.partial(
        _focal_loss_kernel,
        alpha=float(alpha), gamma=float(gamma),
        block_rows=block_rows, binary_labels=bool(binary_labels))

    partials = pl.pallas_call(
        kernel,
        out_shape=jax.ShapeDtypeStruct((num_cores, SUBLANES, LANES), jnp.float32),
        grid_spec=pltpu.PrefetchScalarGridSpec(
            num_scalar_prefetch=0,
            grid=(num_cores, tiles_per_core),
            in_specs=[tile_spec, tile_spec],
            out_specs=pl.BlockSpec((1, SUBLANES, LANES), lambda c, i: (c, 0, 0)),
        ),
        compiler_params=pltpu.CompilerParams(
            dimension_semantics=("parallel", "arbitrary"),
            vmem_limit_bytes=VMEM_LIMIT_BYTES,
        ),
    )(x, y)

    total = jnp.sum(partials)
    if pad:
        # Each zero-padded (x=0, y=0) element contributed exactly
        # alpha * (0.5 ** gamma) * ln(2); subtract it analytically.
        zero_loss = float(alpha) * (0.5 ** float(gamma)) * math.log(2.0)
        total = total - jnp.float32(pad * zero_loss)
    return (total / n_valid).astype(jnp.float32)


def _reference(logits, labels, alpha=0.25, gamma=2.0):
    x = logits.astype(jnp.float32)
    y = labels.astype(jnp.float32)
    bce = jnp.maximum(x, 0.0) - x * y + jnp.log1p(jnp.exp(-jnp.abs(x)))
    pt = jnp.exp(-bce)
    return jnp.mean(alpha * (1.0 - pt) ** gamma * bce)


if __name__ == "__main__":
    key = jax.random.PRNGKey(0)
    k1, k2, k3, k4 = jax.random.split(key, 4)

    # Small NCHW shape consistent with a segmentation-style use of this loss.
    logits = jax.random.normal(k1, (2, 4, 16, 16), dtype=jnp.float32)
    labels = (jax.random.uniform(k2, (2, 4, 16, 16)) > 0.5).astype(jnp.float32)

    out = binary_focal_loss(logits, labels, alpha=0.25, gamma=2.0)
    out = jax.block_until_ready(out)
    ref = _reference(logits, labels, alpha=0.25, gamma=2.0)
    assert jnp.allclose(out, ref, rtol=1e-4, atol=1e-6), (out, ref)

    # Ragged size: exercises the padded path + analytic pad correction.
    logits2 = jax.random.normal(k3, (3, 5, 7), dtype=jnp.float32)
    labels2 = (jax.random.uniform(k4, (3, 5, 7)) > 0.5).astype(jnp.float32)
    out2 = jax.block_until_ready(binary_focal_loss(logits2, labels2))
    ref2 = _reference(logits2, labels2)
    assert jnp.allclose(out2, ref2, rtol=1e-4, atol=1e-6), (out2, ref2)

    print("KERNEL_OK")
</pallas_src>

<mosaic_0001>
module attributes {stable_mosaic.version = 11 : i64} {
  func.func @_focal_loss_kernel(%arg0: i32, %arg1: i32, %arg2: memref<16x128xf32, #tpu.memory_space<vmem>>, %arg3: memref<16x128xf32, #tpu.memory_space<vmem>>, %arg4: memref<1x8x128xf32, #tpu.memory_space<vmem>>) attributes {dimension_semantics = [#tpu.dimension_semantics<parallel>, #tpu.dimension_semantics<arbitrary>], iteration_bounds = array<i64: 1, 1>, scalar_prefetch = 0 : i64, scratch_operands = 0 : i64, tpu.core_type = #tpu.core_type<tc>, window_params = [{transform_indices = @transform_0, window_bounds = array<i64: 16, 128>}, {transform_indices = @transform_1, window_bounds = array<i64: 16, 128>}, {transform_indices = @transform_2, window_bounds = array<i64: 1, 8, 128>}]} {
    %c0_i32 = arith.constant 0 : i32
    %0 = arith.cmpi eq, %arg1, %c0_i32 : i32
    %1 = arith.extui %0 : i1 to i32
    %c0_i32_0 = arith.constant 0 : i32
    %2 = arith.cmpi ne, %1, %c0_i32_0 : i32
    scf.if %2 {
      %cst_18 = arith.constant 0.000000e+00 : f32
      %39 = vector.broadcast %cst_18 : f32 to vector<1x8x128xf32>
      %c0_19 = arith.constant 0 : index
      %c0_20 = arith.constant 0 : index
      %c0_21 = arith.constant 0 : index
      %40 = vector.load %arg4[%c0_19, %c0_20, %c0_21] : memref<1x8x128xf32, #tpu.memory_space<vmem>>, vector<1x8x128xf32>
      tpu.vector_store %arg4[%c0_19, %c0_20, %c0_21], %39 {strides = array<i32>} : memref<1x8x128xf32, #tpu.memory_space<vmem>>, vector<1x8x128xf32>,
    } else {
    }
    %c0 = arith.constant 0 : index
    %c0_1 = arith.constant 0 : index
    %3 = vector.load %arg2[%c0, %c0_1] : memref<16x128xf32, #tpu.memory_space<vmem>>, vector<16x128xf32>
    %c0_2 = arith.constant 0 : index
    %c0_3 = arith.constant 0 : index
    %4 = vector.load %arg3[%c0_2, %c0_3] : memref<16x128xf32, #tpu.memory_space<vmem>>, vector<16x128xf32>
    %5 = math.absf %3 : vector<16x128xf32>
    %cst = arith.constant 0.000000e+00 : f32
    %6 = vector.broadcast %cst : f32 to vector<16x128xf32>
    %7 = arith.subf %6, %5 : vector<16x128xf32>
    %8 = math.exp %7 : vector<16x128xf32>
    %cst_4 = arith.constant 0.000000e+00 : f32
    %9 = vector.broadcast %cst_4 : f32 to vector<16x128xf32>
    %10 = arith.maximumf %3, %9 : vector<16x128xf32>
    %11 = arith.mulf %3, %4 : vector<16x128xf32>
    %12 = arith.subf %10, %11 : vector<16x128xf32>
    %13 = math.log1p %8 : vector<16x128xf32>
    %14 = arith.addf %12, %13 : vector<16x128xf32>
    %cst_5 = arith.constant 0.000000e+00 : f32
    %15 = vector.broadcast %cst_5 : f32 to vector<16x128xf32>
    %16 = arith.cmpf ogt, %3, %15 : vector<16x128xf32>
    %cst_6 = arith.constant 5.000000e-01 : f32
    %17 = vector.broadcast %cst_6 : f32 to vector<16x128xf32>
    %18 = arith.cmpf ogt, %4, %17 : vector<16x128xf32>
    %19 = arith.xori %16, %18 : vector<16x128xi1>
    %cst_7 = arith.constant 1.000000e+00 : f32
    %20 = vector.broadcast %cst_7 : f32 to vector<16x128xf32>
    %21 = arith.select %19, %8, %20 : vector<16x128xi1>, vector<16x128xf32>
    %cst_8 = arith.constant 1.000000e+00 : f32
    %22 = vector.broadcast %cst_8 : f32 to vector<16x128xf32>
    %23 = arith.addf %22, %8 : vector<16x128xf32>
    %24 = arith.divf %21, %23 : vector<16x128xf32>
    %cst_9 = arith.constant 1.000000e+00 : f32
    %25 = vector.broadcast %cst_9 : f32 to vector<16x128xf32>
    %26 = arith.subf %25, %24 : vector<16x128xf32>
    %27 = arith.mulf %26, %26 : vector<16x128xf32>
    %cst_10 = arith.constant 2.500000e-01 : f32
    %28 = vector.broadcast %cst_10 : f32 to vector<16x128xf32>
    %29 = arith.mulf %28, %27 : vector<16x128xf32>
    %30 = arith.mulf %29, %14 : vector<16x128xf32>
    %c0_11 = arith.constant 0 : index
    %c0_12 = arith.constant 0 : index
    %c0_13 = arith.constant 0 : index
    %31 = vector.load %arg4[%c0_11, %c0_12, %c0_13] : memref<1x8x128xf32, #tpu.memory_space<vmem>>, vector<1x8x128xf32>
    %32 = vector.shape_cast %31 : vector<1x8x128xf32> to vector<8x128xf32>
    %33 = vector.shape_cast %30 : vector<16x128xf32> to vector<2x8x128xf32>
    %cst_14 = arith.constant dense<0.000000e+00> : vector<8x128xf32>
    %34 = vector.multi_reduction <add>, %33, %cst_14 [0] : vector<2x8x128xf32> to vector<8x128xf32>
    %35 = arith.addf %32, %34 : vector<8x128xf32>
    %c0_15 = arith.constant 0 : index
    %c0_16 = arith.constant 0 : index
    %c0_17 = arith.constant 0 : index
    %36 = vector.load %arg4[%c0_15, %c0_16, %c0_17] : memref<1x8x128xf32, #tpu.memory_space<vmem>>, vector<1x8x128xf32>
    %37 = vector.shape_cast %36 : vector<1x8x128xf32> to vector<8x128xf32>
    %38 = vector.shape_cast %35 : vector<8x128xf32> to vector<1x8x128xf32>
    tpu.vector_store %arg4[%c0_15, %c0_16, %c0_17], %38 {strides = array<i32>} : memref<1x8x128xf32, #tpu.memory_space<vmem>>, vector<1x8x128xf32>,
    return
  }
  func.func @transform_0(%arg0: i32, %arg1: i32) -> (i32, i32) {
    %c1_i32 = arith.constant 1 : i32
    %0 = arith.muli %arg0, %c1_i32 : i32
    %1 = arith.addi %0, %arg1 : i32
    %c0_i32 = arith.constant 0 : i32
    %c0_i32_0 = arith.constant 0 : i32
    return %1, %c0_i32 : i32, i32
  }
  func.func @transform_1(%arg0: i32, %arg1: i32) -> (i32, i32) {
    %c1_i32 = arith.constant 1 : i32
    %0 = arith.muli %arg0, %c1_i32 : i32
    %1 = arith.addi %0, %arg1 : i32
    %c0_i32 = arith.constant 0 : i32
    %c0_i32_0 = arith.constant 0 : i32
    return %1, %c0_i32 : i32, i32
  }
  func.func @transform_2(%arg0: i32, %arg1: i32) -> (i32, i32, i32) {
    %c0_i32 = arith.constant 0 : i32
    %c0_i32_0 = arith.constant 0 : i32
    %c0_i32_1 = arith.constant 0 : i32
    return %arg0, %c0_i32, %c0_i32_0 : i32, i32, i32
  }
}

</mosaic_0001>

<llo_original>
// kernel: tpu_custom_call.1
$region0: #{tpu_custom_call.1}
  #allocation0 [shape = 'u32[]', space=smem, size = 0x4, offset = 0x4, fixed_abs, tag = 'smem constant byte address 0x4 - core index']
  #allocation1 [shape = 'u32[72,128]{1,0:T(1,128)}', space=vmem, size = 0x9000, scoped, tag = 'internal scratch']
  %s0 = inlined_call_operand.hbm [shape: f32[16,128], index: 0, kind: input, shape index: {}]
  %s1 = inlined_call_operand.hbm [shape: f32[16,128], index: 1, kind: input, shape index: {}]
  %s2 = inlined_call_operand.hbm [shape: f32[1,8,128], index: 2, kind: output, shape index: {}]
  %s3 = sld [smem:[#allocation0]]
  $region30: #{tpu_custom_call.1} parent=0
    _
  %s5 = ssub.s32 1, %s3
  %s6 = scalar_select 0, %s5, %s3
  $region1: #{tpu_custom_call.1} parent=0
    #allocation2 [shape = 'u8[8192]{0}', space=vmem, size = 0x2000, scoped, tag = 'input window, operand 0, single buffered']
    #allocation3 [shape = 's32[1]{0}', space=sflag, size = 0x4, scoped, tag = 'scoped memory for tpu_custom_call.1']
    #allocation4 [shape = 's32[1]{0}', space=sflag, size = 0x4, scoped, tag = 'scoped memory for tpu_custom_call.1']
    #allocation5 [shape = 'u8[8192]{0}', space=vmem, size = 0x2000, scoped, tag = 'input window, operand 1, single buffered']
    #allocation6 [shape = 's32[1]{0}', space=sflag, size = 0x4, scoped, tag = 'scoped memory for tpu_custom_call.1']
    #allocation7 [shape = 'u8[4096]{0}', space=vmem, size = 0x1000, scoped, tag = 'output window, operand 0, single buffered']
    %7 = vsyncpa [#allocation3], 0
    %8 = vsyncpa [#allocation6], 0
    %9 = vsyncpa [#allocation4], 0
    // Predicated region
    $region2: #{tpu_custom_call.1} parent=1 // pred_check
      _
    $region3: #{tpu_custom_call.1} parent=1 // pred_check_branch
      %11 = sbr.rel (0) target = $region5
    $region4: #{tpu_custom_call.1} parent=1 // pred_region
      %s12 = sadd.s32 0, 0
      %s13 = smul.u32 2, %s12
      %15 = vsyncadd [#allocation3], 0
      %s16 = smul.addr %s13, 8
      %s17 = scalar_lea.hbm %s0, %s16
      %s18 = sshll.u32 %s17, 4
      %s19 = int_to_ptr.hbm [resolvable:$true] %s18
      %s20 = sshll.u32 [#allocation2], 4
      %s21 = int_to_ptr.vmem [resolvable:$true] %s20
      %26 = dma.hbm_to_vmem [thread:$0]  %s19, 256, %s21, [#allocation3], 128, 128, 8
    $region5: #{tpu_custom_call.1} parent=1 // pred_fallthru
      _
    // Predicated region
    $region6: #{tpu_custom_call.1} parent=1 // pred_check
      _
    $region7: #{tpu_custom_call.1} parent=1 // pred_check_branch
      %28 = sbr.rel (0) target = $region9
    $region8: #{tpu_custom_call.1} parent=1 // pred_region
      %s29 = sadd.s32 0, 0
      %s30 = smul.u32 2, %s29
      %32 = vsyncadd [#allocation6], 0
      %s33 = smul.addr %s30, 8
      %s34 = scalar_lea.hbm %s1, %s33
      %s35 = sshll.u32 %s34, 4
      %s36 = int_to_ptr.hbm [resolvable:$true] %s35
      %s37 = sshll.u32 [#allocation5], 4
      %s38 = int_to_ptr.vmem [resolvable:$true] %s37
      %43 = dma.hbm_to_vmem [thread:$0]  %s36, 256, %s38, [#allocation6], 128, 128, 8
    $region9: #{tpu_custom_call.1} parent=1 // pred_fallthru
      _
    // Predicated region
    $region10: #{tpu_custom_call.1} parent=1 // pred_check
      _
    $region11: #{tpu_custom_call.1} parent=1 // pred_check_branch
      %45 = sbr.rel (0) target = $region13
    $region12: #{tpu_custom_call.1} parent=1 // pred_region
      %47 = dma.done [#allocation3], 256
    $region13: #{tpu_custom_call.1} parent=1 // pred_fallthru
      _
    // Predicated region
    $region14: #{tpu_custom_call.1} parent=1 // pred_check
      _
    $region15: #{tpu_custom_call.1} parent=1 // pred_check_branch
      %49 = sbr.rel (0) target = $region17
    $region16: #{tpu_custom_call.1} parent=1 // pred_region
      %51 = dma.done [#allocation6], 256
    $region17: #{tpu_custom_call.1} parent=1 // pred_fallthru
      _
    %s52 = sadd.s32 0, 0
    %s53 = smul.u32 2, %s52
    %s54 = sadd.s32 0, 0
    %s55 = smul.u32 2, %s54
    %p56 = scmp.eq.s32.totalorder 0, 0
    // Predicated region
    $region18: #{tpu_custom_call.1} parent=1 // pred_check
      %p57 = pneg %p56
    $region19: #{tpu_custom_call.1} parent=1 // pred_check_branch
      %59 = sbr.rel (%p57) target = $region21
    $region20: #{tpu_custom_call.1} parent=1 // pred_region
      %60 = vst [vmem:[#allocation7] sm:$0xff] 0.0
    $region21: #{tpu_custom_call.1} parent=1 // pred_fallthru
      _
    %v61 = vld [vmem:[#allocation2] sm:$0xff]
    %v62 = vld [vmem:[#allocation2 + $0x8] sm:$0xff]
    %v63 = vld [vmem:[#allocation5] sm:$0xff]
    %v64 = vld [vmem:[#allocation5 + $0x8] sm:$0xff]
    %v65 = vand.u32 2147483647, %v61
    %v66 = vand.u32 2147483647, %v62
    %v67 = vsub.f32 0.0, %v65
    %v68 = vsub.f32 0.0, %v66
    %v69 = vmul.f32 %v67, 1.442695
    %v70 = vpow.pop %v69
    %v71 = vmul.f32 %v68, 1.442695
    %v72 = vpow.pop %v71
    %v73 = vmax.f32 %v61, 0.0
    %v74 = vmax.f32 %v62, 0.0
    %v75 = vmul.f32 %v61, %v63
    %v76 = vmul.f32 %v62, %v64
    %v77 = vsub.f32 %v73, %v75
    %v78 = vsub.f32 %v74, %v76
    %v79 = vadd.f32 %v70, 1.0
    %v80 = vlog2.pop %v79
    %v81 = vmul.f32 %v80, 0.6931472
    %v82 = vmul.f32 -0.5, %v70
    %v83 = vadd.f32 %v82, 1.0
    %v84 = vmul.f32 %v83, %v70
    %v85 = vand.u32 2147483647, %v70
    %vm86 = vcmp.lt.f32.partialorder %v85, 0.0004427343
    %v87 = vsel %vm86, %v84, %v81
    %v88 = vadd.f32 %v72, 1.0
    %v89 = vlog2.pop %v88
    %v90 = vmul.f32 %v89, 0.6931472
    %v91 = vmul.f32 -0.5, %v72
    %v92 = vadd.f32 %v91, 1.0
    %v93 = vmul.f32 %v92, %v72
    %v94 = vand.u32 2147483647, %v72
    %vm95 = vcmp.lt.f32.partialorder %v94, 0.0004427343
    %v96 = vsel %vm95, %v93, %v90
    %v97 = vadd.f32 %v77, %v87
    %v98 = vadd.f32 %v78, %v96
    %vm99 = vcmp.gt.f32.partialorder %v61, 0.0
    %vm100 = vcmp.gt.f32.partialorder %v62, 0.0
    %vm101 = vcmp.gt.f32.partialorder %v63, 0.5
    %vm102 = vcmp.gt.f32.partialorder %v64, 0.5
    %vm103 = vmxor %vm99, %vm101
    %vm104 = vmxor %vm100, %vm102
    %v105 = vsel %vm103, %v70, 1.0
    %v106 = vsel %vm104, %v72, 1.0
    %v107 = vadd.f32 %v70, 1.0
    %v108 = vadd.f32 %v72, 1.0
    %v109 = vrcp.pop %v107
    %v110 = vmul.f32 %v107, %v109
    %v111 = vsub.f32 1.0, %v110
    %v112 = vmul.f32 %v109, %v111
    %v113 = vadd.f32 %v109, %v112
    %vm114 = vweird.f32 %v107
    %vm115 = vweird.f32 %v109
    %vm116 = vmor %vm114, %vm115
    %v117 = vsel %vm116, %v109, %v113
    %v118 = vand.u32 2147483647, %v107
    %vm119 = vcmp.eq.f32.partialorder %v118, 8.507059e+37
    %v120 = vand.u32 %v107, 2147483648
    %v121 = vor.u32 1.1754944e-38, %v120
    %v122 = vsel %vm119, %v121, %v117
    %v123 = vmul.f32 %v105, %v122
    %v124 = vrcp.pop %v108
    %v125 = vmul.f32 %v108, %v124
    %v126 = vsub.f32 1.0, %v125
    %v127 = vmul.f32 %v124, %v126
    %v128 = vadd.f32 %v124, %v127
    %vm129 = vweird.f32 %v108
    %vm130 = vweird.f32 %v124
    %vm131 = vmor %vm129, %vm130
    %v132 = vsel %vm131, %v124, %v128
    %v133 = vand.u32 2147483647, %v108
    %vm134 = vcmp.eq.f32.partialorder %v133, 8.507059e+37
    %v135 = vand.u32 %v108, 2147483648
    %v136 = vor.u32 1.1754944e-38, %v135
    %v137 = vsel %vm134, %v136, %v132
    %v138 = vmul.f32 %v106, %v137
    %v139 = vsub.f32 1.0, %v123
    %v140 = vsub.f32 1.0, %v138
    %v141 = vmul.f32 %v139, %v139
    %v142 = vmul.f32 %v140, %v140
    %v143 = vmul.f32 %v141, 0.25
    %v144 = vmul.f32 %v142, 0.25
    %v145 = vmul.f32 %v143, %v97
    %v146 = vmul.f32 %v144, %v98
    %v147 = vld [vmem:[#allocation7] sm:$0xff]
    %v148 = vadd.f32 %v145, %v146
    %v149 = vadd.f32 %v147, %v148
    %150 = vst [vmem:[#allocation7] sm:$0xff] %v149
    // Predicated region
    $region22: #{tpu_custom_call.1} parent=1 // pred_check
      _
    $region23: #{tpu_custom_call.1} parent=1 // pred_check_branch
      %152 = sbr.rel (0) target = $region25
    $region24: #{tpu_custom_call.1} parent=1 // pred_region
      %154 = vsyncadd [#allocation4], 0
      %s156 = sshll.u32 [#allocation7], 4
      %s157 = int_to_ptr.vmem [resolvable:$true] %s156
      %s158 = sshll.u32 %s2, 4
      %s159 = int_to_ptr.hbm [resolvable:$true] %s158
      %161 = dma.vmem_to_hbm [thread:$0]  %s157, 128, %s159, [#allocation4]
    $region25: #{tpu_custom_call.1} parent=1 // pred_fallthru
      _
    // Predicated region
    $region26: #{tpu_custom_call.1} parent=1 // pred_check
      _
    $region27: #{tpu_custom_call.1} parent=1 // pred_check_branch
      %163 = sbr.rel (0) target = $region29
    $region28: #{tpu_custom_call.1} parent=1 // pred_region
      %165 = dma.done [#allocation4], 128
    $region29: #{tpu_custom_call.1} parent=1 // pred_fallthru
      _
    %166 = vsyncpa [#allocation3], 1
    %167 = vsyncpa [#allocation6], 1
    %168 = vsyncpa [#allocation4], 1

</llo_original>
